<compile_context>
chip_gen: v7x
topology: tpu7x:2x2x1
jax: 0.10.0
libtpu: 0.0.40
codegen_flags: <defaults>
</compile_context>

<pallas_src>
import functools

import jax
import jax.numpy as jnp
from jax.experimental import pallas as pl
from jax.experimental.pallas import tpu as pltpu

# ----------------------------- configuration --------------------------------
BATCH = 2
CHANNELS = 8          # in_channels == out_channels
LENGTH = 128          # sequence length (lane axis)
NUM_BLOCKS = 4        # dilations 1, 2, 4, 8
KSIZE = 3


# ------------------------------- kernel -------------------------------------
def wavenet_kernel(x_ref, w_ref, b_ref, o_ref, stack_ref, *, num_blocks, seq_len):
    """Residual chain of dilated 3-tap convs (possibly several sequences folded
    onto the lane axis).

    x_ref:     (1, C, Lt)                f32   Lt = n_seqs * seq_len (lanes)
    w_ref:     (num_blocks, C_out, 3*C)  bf16  pre-fused 3-tap weights
    b_ref:     (num_blocks, C_out, Lt)   f32   bias pre-broadcast to lane width
    o_ref:     (1, C, Lt)                f32
    stack_ref: (3*C, Lt)                 f32   persistent VMEM tap stack
    """
    x = x_ref[0]                                   # (C, Lt)
    C, Lt = x.shape

    # Position of each lane within its own sequence (batch-fold aware).
    t = jax.lax.broadcasted_iota(jnp.int32, (C, Lt), dimension=1)
    if Lt != seq_len:
        t = t % seq_len

    for i in range(num_blocks):                    # static unroll
        d = 2 ** i
        # x_m[t] = x[t-d] (zero where pos < d); x_p[t] = x[t+d] (zero where
        # pos >= L-d).  Rolls never cross a sequence boundary where unmasked.
        x_m = jnp.where(t >= d, pltpu.roll(x, shift=d, axis=1), 0.0)
        x_p = jnp.where(t < seq_len - d, pltpu.roll(x, shift=Lt - d, axis=1), 0.0)

        # Persistent tap stack in VMEM -- replaces the per-block concatenate.
        stack_ref[0:C, :] = x_m
        stack_ref[C:2 * C, :] = x
        stack_ref[2 * C:3 * C, :] = x_p

        # One fused matmul per block: bf16 operands, f32 accumulate (MXU-native).
        # Per-block weight/bias loads (static ref views) -- nothing is hoisted.
        conv = jnp.dot(w_ref[i], stack_ref[...].astype(jnp.bfloat16),
                       preferred_element_type=jnp.float32)
        x = x + jnp.tanh(conv + b_ref[i])          # tanh on EUP, residual f32 on VPU

    o_ref[0] = x.astype(o_ref.dtype)


# ------------------------------ wrapper --------------------------------------
def _dual_tensorcore_chip():
    """True on generations with 2 TensorCores per chip (v7x)."""
    try:
        kind = jax.devices()[0].device_kind.lower()
    except Exception:
        return False
    return "v7" in kind


def wavenet_block(x_ncl, w_torch, biases):
    """x_ncl: (B, C, L) float32 (PyTorch Conv1d layout).
    w_torch: (num_blocks, C_out, C_in, K=3)  (PyTorch Conv1d weight layout).
    biases:  (num_blocks, C_out)."""
    B, C, L = x_ncl.shape
    num_blocks, c_out, c_in, k = w_torch.shape

    # Fuse the 3 taps into one contraction:  Wf[i, o, kk*C_in + c] = w[i, o, c, kk],
    # matching the stacked input order [x(t-d); x(t); x(t+d)].  bf16 for the MXU.
    w_fused = jnp.transpose(w_torch, (0, 1, 3, 2)).reshape(num_blocks, c_out, k * c_in)
    w_bf16 = w_fused.astype(jnp.bfloat16)

    # v7x: keep a parallel batch grid (one batch element per TensorCore).
    # v5e/v6e (single TC): fold the batch onto the lane axis -> one grid step,
    # N = B*L per matmul, half the per-step overhead.
    batch_parallel = _dual_tensorcore_chip() and (B % 2 == 0)

    if batch_parallel:
        x_in = x_ncl                                               # (B, C, L)
        grid = (B,)
        n_lanes = L
        dim_sem = ("parallel",)
    else:
        x_in = jnp.transpose(x_ncl, (1, 0, 2)).reshape(1, C, B * L)  # (1, C, B*L)
        grid = (1,)
        n_lanes = B * L
        dim_sem = ("arbitrary",)

    # Pre-broadcast the bias to the lane width -> plain VPU add in the kernel.
    b_wide = jnp.broadcast_to(biases[:, :, None],
                              (num_blocks, c_out, n_lanes)).astype(jnp.float32)

    out = pl.pallas_call(
        functools.partial(wavenet_kernel, num_blocks=num_blocks, seq_len=L),
        out_shape=jax.ShapeDtypeStruct(x_in.shape, x_ncl.dtype),
        grid_spec=pltpu.PrefetchScalarGridSpec(
            num_scalar_prefetch=0,
            grid=grid,
            in_specs=[
                pl.BlockSpec((1, C, n_lanes), lambda b: (b, 0, 0)),
                pl.BlockSpec((num_blocks, c_out, k * c_in), lambda b: (0, 0, 0)),
                pl.BlockSpec((num_blocks, c_out, n_lanes), lambda b: (0, 0, 0)),
            ],
            out_specs=pl.BlockSpec((1, C, n_lanes), lambda b: (b, 0, 0)),
            scratch_shapes=[pltpu.VMEM((k * c_in, n_lanes), jnp.float32)],
        ),
        compiler_params=pltpu.CompilerParams(dimension_semantics=dim_sem),
    )(x_in, w_bf16, b_wide)

    if batch_parallel:
        return out
    return jnp.transpose(out.reshape(C, B, L), (1, 0, 2))


# --------------------------- pure-JAX reference -------------------------------
def reference_forward(x_ncl, w_torch, biases):
    """Independent f32 reference using lax.conv_general_dilated (matches nn.Conv1d)."""
    num_blocks = w_torch.shape[0]
    x = x_ncl
    for i in range(num_blocks):
        d = 2 ** i
        y = jax.lax.conv_general_dilated(
            x,
            w_torch[i],                      # (C_out, C_in, K)
            window_strides=(1,),
            padding=[(d, d)],
            rhs_dilation=(d,),
            dimension_numbers=("NCH", "OIH", "NCH"),
        )
        x = x + jnp.tanh(y + biases[i][None, :, None])
    return x


# --------------------------------- main --------------------------------------
if __name__ == "__main__":
    key = jax.random.PRNGKey(0)
    kx, kw, kb = jax.random.split(key, 3)

    # Deterministic parameter init (PyTorch-style uniform bound = 1/sqrt(fan_in*K)).
    bound = 1.0 / jnp.sqrt(CHANNELS * KSIZE)
    w_torch = jax.random.uniform(
        kw, (NUM_BLOCKS, CHANNELS, CHANNELS, KSIZE),
        minval=-bound, maxval=bound, dtype=jnp.float32)
    biases = jax.random.uniform(
        kb, (NUM_BLOCKS, CHANNELS),
        minval=-bound, maxval=bound, dtype=jnp.float32)

    # Input in PyTorch Conv1d layout (B, C, L).
    x = jax.random.normal(kx, (BATCH, CHANNELS, LENGTH), dtype=jnp.float32)

    out = jax.block_until_ready(wavenet_block(x, w_torch, biases))
    ref = jax.block_until_ready(reference_forward(x, w_torch, biases))

    assert out.shape == x.shape, (out.shape, x.shape)
    max_err = float(jnp.max(jnp.abs(out - ref)))
    # bf16 matmul operands (f32 accumulate/residual) vs. the all-f32 reference:
    # tolerance loosened accordingly.
    assert jnp.allclose(out, ref, atol=1e-1, rtol=1e-2), max_err

    print("KERNEL_OK")
</pallas_src>

<mosaic_0001>
module attributes {stable_mosaic.version = 11 : i64} {
  func.func @wavenet_kernel(%arg0: i32, %arg1: memref<1x8x256xf32, #tpu.memory_space<vmem>>, %arg2: memref<4x8x24xbf16, #tpu.memory_space<vmem>>, %arg3: memref<4x8x256xf32, #tpu.memory_space<vmem>>, %arg4: memref<1x8x256xf32, #tpu.memory_space<vmem>>, %arg5: memref<24x256xf32, #tpu.memory_space<vmem>>) attributes {dimension_semantics = [#tpu.dimension_semantics<arbitrary>], iteration_bounds = array<i64: 1>, scalar_prefetch = 0 : i64, scratch_operands = 1 : i64, tpu.core_type = #tpu.core_type<tc>, window_params = [{transform_indices = @transform_0, window_bounds = array<i64: 1, 8, 256>}, {pipeline_mode = #tpu.pipeline_mode<synchronous>, transform_indices = @transform_1, window_bounds = array<i64: 4, 8, 24>}, {pipeline_mode = #tpu.pipeline_mode<synchronous>, transform_indices = @transform_2, window_bounds = array<i64: 4, 8, 256>}, {transform_indices = @transform_3, window_bounds = array<i64: 1, 8, 256>}]} {
    %c0 = arith.constant 0 : index
    %c0_0 = arith.constant 0 : index
    %c0_1 = arith.constant 0 : index
    %0 = vector.load %arg1[%c0, %c0_0, %c0_1] : memref<1x8x256xf32, #tpu.memory_space<vmem>>, vector<1x8x256xf32>
    %1 = vector.shape_cast %0 : vector<1x8x256xf32> to vector<8x256xf32>
    %2 = tpu.iota {dimensions = array<i32: 1>} : vector<8x256xi32>
    %c128_i32 = arith.constant 128 : i32
    %c0_i32 = arith.constant 0 : i32
    %3 = arith.cmpi eq, %c128_i32, %c0_i32 : i32
    %c1_i32 = arith.constant 1 : i32
    %4 = arith.select %3, %c1_i32, %c128_i32 : i32
    %5 = vector.broadcast %4 : i32 to vector<8x256xi32>
    %6 = arith.remsi %2, %5 : vector<8x256xi32>
    %c0_i32_2 = arith.constant 0 : i32
    %7 = vector.broadcast %c0_i32_2 : i32 to vector<8x256xi32>
    %8 = arith.cmpi ne, %6, %7 : vector<8x256xi32>
    %c0_i32_3 = arith.constant 0 : i32
    %9 = vector.broadcast %c0_i32_3 : i32 to vector<8x256xi32>
    %10 = arith.cmpi slt, %6, %9 : vector<8x256xi32>
    %c0_i32_4 = arith.constant 0 : i32
    %11 = arith.cmpi slt, %4, %c0_i32_4 : i32
    %12 = vector.broadcast %11 : i1 to vector<8x256xi1>
    %13 = vector.broadcast %12 : vector<8x256xi1> to vector<8x256xi1>
    %14 = arith.xori %10, %13 : vector<8x256xi1>
    %15 = arith.andi %14, %8 : vector<8x256xi1>
    %16 = vector.broadcast %4 : i32 to vector<8x256xi32>
    %17 = arith.addi %6, %16 : vector<8x256xi32>
    %18 = arith.select %15, %17, %6 : vector<8x256xi1>, vector<8x256xi32>
    %c1_i32_5 = arith.constant 1 : i32
    %19 = vector.broadcast %c1_i32_5 : i32 to vector<8x256xi32>
    %20 = arith.cmpi sge, %18, %19 : vector<8x256xi32>
    %c1_i32_6 = arith.constant 1 : i32
    %21 = tpu.dynamic_rotate %1 by %c1_i32_6 dim 1 : vector<8x256xf32>, i32 -> vector<8x256xf32>
    %cst = arith.constant 0.000000e+00 : f32
    %22 = vector.broadcast %cst : f32 to vector<8x256xf32>
    %23 = arith.select %20, %21, %22 : vector<8x256xi1>, vector<8x256xf32>
    %c127_i32 = arith.constant 127 : i32
    %24 = vector.broadcast %c127_i32 : i32 to vector<8x256xi32>
    %25 = arith.cmpi slt, %18, %24 : vector<8x256xi32>
    %c255_i32 = arith.constant 255 : i32
    %26 = tpu.dynamic_rotate %1 by %c255_i32 dim 1 : vector<8x256xf32>, i32 -> vector<8x256xf32>
    %cst_7 = arith.constant 0.000000e+00 : f32
    %27 = vector.broadcast %cst_7 : f32 to vector<8x256xf32>
    %28 = arith.select %25, %26, %27 : vector<8x256xi1>, vector<8x256xf32>
    %c0_8 = arith.constant 0 : index
    %c0_9 = arith.constant 0 : index
    %29 = vector.load %arg5[%c0_8, %c0_9] : memref<24x256xf32, #tpu.memory_space<vmem>>, vector<8x256xf32>
    tpu.vector_store %arg5[%c0_8, %c0_9], %23 {strides = array<i32>} : memref<24x256xf32, #tpu.memory_space<vmem>>, vector<8x256xf32>,
    %c8 = arith.constant 8 : index
    %c0_10 = arith.constant 0 : index
    %30 = vector.load %arg5[%c8, %c0_10] : memref<24x256xf32, #tpu.memory_space<vmem>>, vector<8x256xf32>
    tpu.vector_store %arg5[%c8, %c0_10], %1 {strides = array<i32>} : memref<24x256xf32, #tpu.memory_space<vmem>>, vector<8x256xf32>,
    %c16 = arith.constant 16 : index
    %c0_11 = arith.constant 0 : index
    %31 = vector.load %arg5[%c16, %c0_11] : memref<24x256xf32, #tpu.memory_space<vmem>>, vector<8x256xf32>
    tpu.vector_store %arg5[%c16, %c0_11], %28 {strides = array<i32>} : memref<24x256xf32, #tpu.memory_space<vmem>>, vector<8x256xf32>,
    %c0_12 = arith.constant 0 : index
    %c0_13 = arith.constant 0 : index
    %c0_14 = arith.constant 0 : index
    %32 = vector.load %arg2[%c0_12, %c0_13, %c0_14] : memref<4x8x24xbf16, #tpu.memory_space<vmem>>, vector<1x8x24xbf16>
    %33 = vector.shape_cast %32 : vector<1x8x24xbf16> to vector<8x24xbf16>
    %c0_15 = arith.constant 0 : index
    %c0_16 = arith.constant 0 : index
    %34 = vector.load %arg5[%c0_15, %c0_16] : memref<24x256xf32, #tpu.memory_space<vmem>>, vector<24x256xf32>
    %35 = arith.truncf %34 : vector<24x256xf32> to vector<24x256xbf16>
    %cst_17 = arith.constant dense<0.000000e+00> : vector<8x256xf32>
    %36 = tpu.matmul %33, %35, %cst_17 {dimension_numbers = #tpu.dot_dimension_numbers<[1], [0], [0], [1], [0, 0, 1, 1], [], []>} : vector<8x24xbf16>, vector<24x256xbf16>, vector<8x256xf32> -> vector<8x256xf32>
    %c0_18 = arith.constant 0 : index
    %c0_19 = arith.constant 0 : index
    %c0_20 = arith.constant 0 : index
    %37 = vector.load %arg3[%c0_18, %c0_19, %c0_20] : memref<4x8x256xf32, #tpu.memory_space<vmem>>, vector<1x8x256xf32>
    %38 = vector.shape_cast %37 : vector<1x8x256xf32> to vector<8x256xf32>
    %39 = arith.addf %36, %38 : vector<8x256xf32>
    %40 = math.tanh %39 : vector<8x256xf32>
    %41 = arith.addf %1, %40 : vector<8x256xf32>
    %c2_i32 = arith.constant 2 : i32
    %42 = vector.broadcast %c2_i32 : i32 to vector<8x256xi32>
    %43 = arith.cmpi sge, %18, %42 : vector<8x256xi32>
    %c2_i32_21 = arith.constant 2 : i32
    %44 = tpu.dynamic_rotate %41 by %c2_i32_21 dim 1 : vector<8x256xf32>, i32 -> vector<8x256xf32>
    %cst_22 = arith.constant 0.000000e+00 : f32
    %45 = vector.broadcast %cst_22 : f32 to vector<8x256xf32>
    %46 = arith.select %43, %44, %45 : vector<8x256xi1>, vector<8x256xf32>
    %c126_i32 = arith.constant 126 : i32
    %47 = vector.broadcast %c126_i32 : i32 to vector<8x256xi32>
    %48 = arith.cmpi slt, %18, %47 : vector<8x256xi32>
    %c254_i32 = arith.constant 254 : i32
    %49 = tpu.dynamic_rotate %41 by %c254_i32 dim 1 : vector<8x256xf32>, i32 -> vector<8x256xf32>
    %cst_23 = arith.constant 0.000000e+00 : f32
    %50 = vector.broadcast %cst_23 : f32 to vector<8x256xf32>
    %51 = arith.select %48, %49, %50 : vector<8x256xi1>, vector<8x256xf32>
    %c0_24 = arith.constant 0 : index
    %c0_25 = arith.constant 0 : index
    %52 = vector.load %arg5[%c0_24, %c0_25] : memref<24x256xf32, #tpu.memory_space<vmem>>, vector<8x256xf32>
    tpu.vector_store %arg5[%c0_24, %c0_25], %46 {strides = array<i32>} : memref<24x256xf32, #tpu.memory_space<vmem>>, vector<8x256xf32>,
    %c8_26 = arith.constant 8 : index
    %c0_27 = arith.constant 0 : index
    %53 = vector.load %arg5[%c8_26, %c0_27] : memref<24x256xf32, #tpu.memory_space<vmem>>, vector<8x256xf32>
    tpu.vector_store %arg5[%c8_26, %c0_27], %41 {strides = array<i32>} : memref<24x256xf32, #tpu.memory_space<vmem>>, vector<8x256xf32>,
    %c16_28 = arith.constant 16 : index
    %c0_29 = arith.constant 0 : index
    %54 = vector.load %arg5[%c16_28, %c0_29] : memref<24x256xf32, #tpu.memory_space<vmem>>, vector<8x256xf32>
    tpu.vector_store %arg5[%c16_28, %c0_29], %51 {strides = array<i32>} : memref<24x256xf32, #tpu.memory_space<vmem>>, vector<8x256xf32>,
    %c1 = arith.constant 1 : index
    %c0_30 = arith.constant 0 : index
    %c0_31 = arith.constant 0 : index
    %55 = vector.load %arg2[%c1, %c0_30, %c0_31] : memref<4x8x24xbf16, #tpu.memory_space<vmem>>, vector<1x8x24xbf16>
    %56 = vector.shape_cast %55 : vector<1x8x24xbf16> to vector<8x24xbf16>
    %c0_32 = arith.constant 0 : index
    %c0_33 = arith.constant 0 : index
    %57 = vector.load %arg5[%c0_32, %c0_33] : memref<24x256xf32, #tpu.memory_space<vmem>>, vector<24x256xf32>
    %58 = arith.truncf %57 : vector<24x256xf32> to vector<24x256xbf16>
    %cst_34 = arith.constant dense<0.000000e+00> : vector<8x256xf32>
    %59 = tpu.matmul %56, %58, %cst_34 {dimension_numbers = #tpu.dot_dimension_numbers<[1], [0], [0], [1], [0, 0, 1, 1], [], []>} : vector<8x24xbf16>, vector<24x256xbf16>, vector<8x256xf32> -> vector<8x256xf32>
    %c1_35 = arith.constant 1 : index
    %c0_36 = arith.constant 0 : index
    %c0_37 = arith.constant 0 : index
    %60 = vector.load %arg3[%c1_35, %c0_36, %c0_37] : memref<4x8x256xf32, #tpu.memory_space<vmem>>, vector<1x8x256xf32>
    %61 = vector.shape_cast %60 : vector<1x8x256xf32> to vector<8x256xf32>
    %62 = arith.addf %59, %61 : vector<8x256xf32>
    %63 = math.tanh %62 : vector<8x256xf32>
    %64 = arith.addf %41, %63 : vector<8x256xf32>
    %c4_i32 = arith.constant 4 : i32
    %65 = vector.broadcast %c4_i32 : i32 to vector<8x256xi32>
    %66 = arith.cmpi sge, %18, %65 : vector<8x256xi32>
    %c4_i32_38 = arith.constant 4 : i32
    %67 = tpu.dynamic_rotate %64 by %c4_i32_38 dim 1 : vector<8x256xf32>, i32 -> vector<8x256xf32>
    %cst_39 = arith.constant 0.000000e+00 : f32
    %68 = vector.broadcast %cst_39 : f32 to vector<8x256xf32>
    %69 = arith.select %66, %67, %68 : vector<8x256xi1>, vector<8x256xf32>
    %c124_i32 = arith.constant 124 : i32
    %70 = vector.broadcast %c124_i32 : i32 to vector<8x256xi32>
    %71 = arith.cmpi slt, %18, %70 : vector<8x256xi32>
    %c252_i32 = arith.constant 252 : i32
    %72 = tpu.dynamic_rotate %64 by %c252_i32 dim 1 : vector<8x256xf32>, i32 -> vector<8x256xf32>
    %cst_40 = arith.constant 0.000000e+00 : f32
    %73 = vector.broadcast %cst_40 : f32 to vector<8x256xf32>
    %74 = arith.select %71, %72, %73 : vector<8x256xi1>, vector<8x256xf32>
    %c0_41 = arith.constant 0 : index
    %c0_42 = arith.constant 0 : index
    %75 = vector.load %arg5[%c0_41, %c0_42] : memref<24x256xf32, #tpu.memory_space<vmem>>, vector<8x256xf32>
    tpu.vector_store %arg5[%c0_41, %c0_42], %69 {strides = array<i32>} : memref<24x256xf32, #tpu.memory_space<vmem>>, vector<8x256xf32>,
    %c8_43 = arith.constant 8 : index
    %c0_44 = arith.constant 0 : index
    %76 = vector.load %arg5[%c8_43, %c0_44] : memref<24x256xf32, #tpu.memory_space<vmem>>, vector<8x256xf32>
    tpu.vector_store %arg5[%c8_43, %c0_44], %64 {strides = array<i32>} : memref<24x256xf32, #tpu.memory_space<vmem>>, vector<8x256xf32>,
    %c16_45 = arith.constant 16 : index
    %c0_46 = arith.constant 0 : index
    %77 = vector.load %arg5[%c16_45, %c0_46] : memref<24x256xf32, #tpu.memory_space<vmem>>, vector<8x256xf32>
    tpu.vector_store %arg5[%c16_45, %c0_46], %74 {strides = array<i32>} : memref<24x256xf32, #tpu.memory_space<vmem>>, vector<8x256xf32>,
    %c2 = arith.constant 2 : index
    %c0_47 = arith.constant 0 : index
    %c0_48 = arith.constant 0 : index
    %78 = vector.load %arg2[%c2, %c0_47, %c0_48] : memref<4x8x24xbf16, #tpu.memory_space<vmem>>, vector<1x8x24xbf16>
    %79 = vector.shape_cast %78 : vector<1x8x24xbf16> to vector<8x24xbf16>
    %c0_49 = arith.constant 0 : index
    %c0_50 = arith.constant 0 : index
    %80 = vector.load %arg5[%c0_49, %c0_50] : memref<24x256xf32, #tpu.memory_space<vmem>>, vector<24x256xf32>
    %81 = arith.truncf %80 : vector<24x256xf32> to vector<24x256xbf16>
    %cst_51 = arith.constant dense<0.000000e+00> : vector<8x256xf32>
    %82 = tpu.matmul %79, %81, %cst_51 {dimension_numbers = #tpu.dot_dimension_numbers<[1], [0], [0], [1], [0, 0, 1, 1], [], []>} : vector<8x24xbf16>, vector<24x256xbf16>, vector<8x256xf32> -> vector<8x256xf32>
    %c2_52 = arith.constant 2 : index
    %c0_53 = arith.constant 0 : index
    %c0_54 = arith.constant 0 : index
    %83 = vector.load %arg3[%c2_52, %c0_53, %c0_54] : memref<4x8x256xf32, #tpu.memory_space<vmem>>, vector<1x8x256xf32>
    %84 = vector.shape_cast %83 : vector<1x8x256xf32> to vector<8x256xf32>
    %85 = arith.addf %82, %84 : vector<8x256xf32>
    %86 = math.tanh %85 : vector<8x256xf32>
    %87 = arith.addf %64, %86 : vector<8x256xf32>
    %c8_i32 = arith.constant 8 : i32
    %88 = vector.broadcast %c8_i32 : i32 to vector<8x256xi32>
    %89 = arith.cmpi sge, %18, %88 : vector<8x256xi32>
    %c8_i32_55 = arith.constant 8 : i32
    %90 = tpu.dynamic_rotate %87 by %c8_i32_55 dim 1 : vector<8x256xf32>, i32 -> vector<8x256xf32>
    %cst_56 = arith.constant 0.000000e+00 : f32
    %91 = vector.broadcast %cst_56 : f32 to vector<8x256xf32>
    %92 = arith.select %89, %90, %91 : vector<8x256xi1>, vector<8x256xf32>
    %c120_i32 = arith.constant 120 : i32
    %93 = vector.broadcast %c120_i32 : i32 to vector<8x256xi32>
    %94 = arith.cmpi slt, %18, %93 : vector<8x256xi32>
    %c248_i32 = arith.constant 248 : i32
    %95 = tpu.dynamic_rotate %87 by %c248_i32 dim 1 : vector<8x256xf32>, i32 -> vector<8x256xf32>
    %cst_57 = arith.constant 0.000000e+00 : f32
    %96 = vector.broadcast %cst_57 : f32 to vector<8x256xf32>
    %97 = arith.select %94, %95, %96 : vector<8x256xi1>, vector<8x256xf32>
    %c0_58 = arith.constant 0 : index
    %c0_59 = arith.constant 0 : index
    %98 = vector.load %arg5[%c0_58, %c0_59] : memref<24x256xf32, #tpu.memory_space<vmem>>, vector<8x256xf32>
    tpu.vector_store %arg5[%c0_58, %c0_59], %92 {strides = array<i32>} : memref<24x256xf32, #tpu.memory_space<vmem>>, vector<8x256xf32>,
    %c8_60 = arith.constant 8 : index
    %c0_61 = arith.constant 0 : index
    %99 = vector.load %arg5[%c8_60, %c0_61] : memref<24x256xf32, #tpu.memory_space<vmem>>, vector<8x256xf32>
    tpu.vector_store %arg5[%c8_60, %c0_61], %87 {strides = array<i32>} : memref<24x256xf32, #tpu.memory_space<vmem>>, vector<8x256xf32>,
    %c16_62 = arith.constant 16 : index
    %c0_63 = arith.constant 0 : index
    %100 = vector.load %arg5[%c16_62, %c0_63] : memref<24x256xf32, #tpu.memory_space<vmem>>, vector<8x256xf32>
    tpu.vector_store %arg5[%c16_62, %c0_63], %97 {strides = array<i32>} : memref<24x256xf32, #tpu.memory_space<vmem>>, vector<8x256xf32>,
    %c3 = arith.constant 3 : index
    %c0_64 = arith.constant 0 : index
    %c0_65 = arith.constant 0 : index
    %101 = vector.load %arg2[%c3, %c0_64, %c0_65] : memref<4x8x24xbf16, #tpu.memory_space<vmem>>, vector<1x8x24xbf16>
    %102 = vector.shape_cast %101 : vector<1x8x24xbf16> to vector<8x24xbf16>
    %c0_66 = arith.constant 0 : index
    %c0_67 = arith.constant 0 : index
    %103 = vector.load %arg5[%c0_66, %c0_67] : memref<24x256xf32, #tpu.memory_space<vmem>>, vector<24x256xf32>
    %104 = arith.truncf %103 : vector<24x256xf32> to vector<24x256xbf16>
    %cst_68 = arith.constant dense<0.000000e+00> : vector<8x256xf32>
    %105 = tpu.matmul %102, %104, %cst_68 {dimension_numbers = #tpu.dot_dimension_numbers<[1], [0], [0], [1], [0, 0, 1, 1], [], []>} : vector<8x24xbf16>, vector<24x256xbf16>, vector<8x256xf32> -> vector<8x256xf32>
    %c3_69 = arith.constant 3 : index
    %c0_70 = arith.constant 0 : index
    %c0_71 = arith.constant 0 : index
    %106 = vector.load %arg3[%c3_69, %c0_70, %c0_71] : memref<4x8x256xf32, #tpu.memory_space<vmem>>, vector<1x8x256xf32>
    %107 = vector.shape_cast %106 : vector<1x8x256xf32> to vector<8x256xf32>
    %108 = arith.addf %105, %107 : vector<8x256xf32>
    %109 = math.tanh %108 : vector<8x256xf32>
    %110 = arith.addf %87, %109 : vector<8x256xf32>
    %c0_72 = arith.constant 0 : index
    %c0_73 = arith.constant 0 : index
    %c0_74 = arith.constant 0 : index
    %111 = vector.load %arg4[%c0_72, %c0_73, %c0_74] : memref<1x8x256xf32, #tpu.memory_space<vmem>>, vector<1x8x256xf32>
    %112 = vector.shape_cast %111 : vector<1x8x256xf32> to vector<8x256xf32>
    %113 = vector.shape_cast %110 : vector<8x256xf32> to vector<1x8x256xf32>
    tpu.vector_store %arg4[%c0_72, %c0_73, %c0_74], %113 {strides = array<i32>} : memref<1x8x256xf32, #tpu.memory_space<vmem>>, vector<1x8x256xf32>,
    return
  }
  func.func @transform_0(%arg0: i32) -> (i32, i32, i32) {
    %c0_i32 = arith.constant 0 : i32
    %c0_i32_0 = arith.constant 0 : i32
    %c0_i32_1 = arith.constant 0 : i32
    return %arg0, %c0_i32, %c0_i32_0 : i32, i32, i32
  }
  func.func @transform_1(%arg0: i32) -> (i32, i32, i32) {
    %c0_i32 = arith.constant 0 : i32
    %c0_i32_0 = arith.constant 0 : i32
    %c0_i32_1 = arith.constant 0 : i32
    %c0_i32_2 = arith.constant 0 : i32
    return %c0_i32, %c0_i32_0, %c0_i32_1 : i32, i32, i32
  }
  func.func @transform_2(%arg0: i32) -> (i32, i32, i32) {
    %c0_i32 = arith.constant 0 : i32
    %c0_i32_0 = arith.constant 0 : i32
    %c0_i32_1 = arith.constant 0 : i32
    %c0_i32_2 = arith.constant 0 : i32
    return %c0_i32, %c0_i32_0, %c0_i32_1 : i32, i32, i32
  }
  func.func @transform_3(%arg0: i32) -> (i32, i32, i32) {
    %c0_i32 = arith.constant 0 : i32
    %c0_i32_0 = arith.constant 0 : i32
    %c0_i32_1 = arith.constant 0 : i32
    return %arg0, %c0_i32, %c0_i32_0 : i32, i32, i32
  }
}

</mosaic_0001>

<llo_original>
// kernel: tpu_custom_call.1
$region0: #{tpu_custom_call.1}
  #allocation0 [shape = 'u32[]', space=smem, size = 0x4, offset = 0x4, fixed_abs, tag = 'smem constant byte address 0x4 - core index']
  #allocation1 [shape = 'u32[144,128]{1,0:T(1,128)}', space=vmem, size = 0x12000, scoped, tag = 'internal scratch']
  #allocation2 [shape = 'f32[24,256]{1,0:T(8,128)}', space=vmem, size = 0x6000, scoped, tag = 'scratch operand']
  %s0 = inlined_call_operand.hbm [shape: f32[1,8,256], index: 0, kind: input, shape index: {}]
  %s1 = inlined_call_operand.hbm [shape: bf16[4,8,24], index: 1, kind: input, shape index: {}]
  %s2 = inlined_call_operand.hbm [shape: f32[4,8,256], index: 2, kind: input, shape index: {}]
  %s3 = inlined_call_operand.hbm [shape: f32[1,8,256], index: 3, kind: output, shape index: {}]
  %s4 = sld [smem:[#allocation0]]
  $region34: #{tpu_custom_call.1} parent=0
    _
  %s6 = ssub.s32 1, %s4
  %s7 = scalar_select 0, %s6, %s4
  $region1: #{tpu_custom_call.1} parent=0
    #allocation3 [shape = 'u8[8192]{0}', space=vmem, size = 0x2000, scoped, tag = 'input window, operand 0, single buffered']
    #allocation4 [shape = 's32[1]{0}', space=sflag, size = 0x4, scoped, tag = 'scoped memory for tpu_custom_call.1']
    #allocation5 [shape = 's32[1]{0}', space=sflag, size = 0x4, scoped, tag = 'scoped memory for tpu_custom_call.1']
    #allocation6 [shape = 'u8[8192]{0}', space=vmem, size = 0x2000, scoped, tag = 'input window, operand 1, single buffered']
    #allocation7 [shape = 's32[1]{0}', space=sflag, size = 0x4, scoped, tag = 'scoped memory for tpu_custom_call.1']
    #allocation8 [shape = 'u8[32768]{0}', space=vmem, size = 0x8000, scoped, tag = 'input window, operand 2, single buffered']
    #allocation9 [shape = 'u8[8192]{0}', space=vmem, size = 0x2000, scoped, tag = 'output window, operand 0, single buffered']
    %8 = vsyncpa [#allocation4], 0
    %9 = vsyncpa [#allocation7], 0
    %10 = vsyncpa [#allocation5], 0
    // Predicated region
    $region2: #{tpu_custom_call.1} parent=1 // pred_check
      _
    $region3: #{tpu_custom_call.1} parent=1 // pred_check_branch
      %12 = sbr.rel (0) target = $region5
    $region4: #{tpu_custom_call.1} parent=1 // pred_region
      %s14 = ssub.s32 256, 256
      %15 = vsyncadd [#allocation4], %s14
      %s17 = sshll.u32 [#allocation3], 4
      %s18 = int_to_ptr.vmem [resolvable:$true] %s17
      %20 = dma.hbm_to_vmem [thread:$0]  %s0, 256, %s18, [#allocation4]
    $region5: #{tpu_custom_call.1} parent=1 // pred_fallthru
      _
    // Predicated region
    $region6: #{tpu_custom_call.1} parent=1 // pred_check
      _
    $region7: #{tpu_custom_call.1} parent=1 // pred_check_branch
      %22 = sbr.rel (0) target = $region9
    $region8: #{tpu_custom_call.1} parent=1 // pred_region
      %s24 = ssub.s32 256, 256
      %25 = vsyncadd [#allocation7], %s24
      %s26 = sshll.u32 [#allocation6], 4
      %s27 = int_to_ptr.vmem [resolvable:$true] %s26
      %32 = dma.hbm_to_vmem [thread:$0]  %s1, 256, %s27, [#allocation7], 64, 64, 4
    $region9: #{tpu_custom_call.1} parent=1 // pred_fallthru
      _
    // Predicated region
    $region10: #{tpu_custom_call.1} parent=1 // pred_check
      _
    $region11: #{tpu_custom_call.1} parent=1 // pred_check_branch
      %34 = sbr.rel (0) target = $region13
    $region12: #{tpu_custom_call.1} parent=1 // pred_region
      %s36 = ssub.s32 1024, 1024
      %37 = vsyncadd [#allocation7], %s36
      %s38 = sshll.u32 [#allocation8], 4
      %s39 = int_to_ptr.vmem [resolvable:$true] %s38
      %44 = dma.hbm_to_vmem [thread:$0]  %s2, 1024, %s39, [#allocation7], 256, 256, 16
    $region13: #{tpu_custom_call.1} parent=1 // pred_fallthru
      _
    // Predicated region
    $region14: #{tpu_custom_call.1} parent=1 // pred_check
      _
    $region15: #{tpu_custom_call.1} parent=1 // pred_check_branch
      %46 = sbr.rel (0) target = $region17
    $region16: #{tpu_custom_call.1} parent=1 // pred_region
      %47 = dma.done [#allocation4], 256
    $region17: #{tpu_custom_call.1} parent=1 // pred_fallthru
      _
    // Predicated region
    $region18: #{tpu_custom_call.1} parent=1 // pred_check
      _
    $region19: #{tpu_custom_call.1} parent=1 // pred_check_branch
      %49 = sbr.rel (0) target = $region21
    $region20: #{tpu_custom_call.1} parent=1 // pred_region
      %50 = dma.done [#allocation7], 256
    $region21: #{tpu_custom_call.1} parent=1 // pred_fallthru
      _
    // Predicated region
    $region22: #{tpu_custom_call.1} parent=1 // pred_check
      _
    $region23: #{tpu_custom_call.1} parent=1 // pred_check_branch
      %52 = sbr.rel (0) target = $region25
    $region24: #{tpu_custom_call.1} parent=1 // pred_region
      %53 = dma.done [#allocation7], 1024
    $region25: #{tpu_custom_call.1} parent=1 // pred_fallthru
      _
    %v55 = vld [vmem:[#allocation3] sm:$0xff]
    %v56 = vld [vmem:[#allocation3 + $0x8] sm:$0xff]
    %v57 = vlaneseq
    %v58 = vand.u32 %v57, 127
    %v59 = vadd.s32 %v58, 128
    %vm60 = vcmp.lt.s32.totalorder %v58, 0
    %v61 = vsub.s32 0, %v58
    %v62 = vsel %vm60, %v61, %v58
    %v63 = vshrl.u32 %v62, 7
    %v64 = vand.u32 %v62, 127
    %v65 = vsub.s32 0, %v64
    %v66 = vsel %vm60, %v65, %v64
    %vm67 = vcmp.lt.s32.totalorder %v59, 0
    %v68 = vsub.s32 0, %v59
    %v69 = vsel %vm67, %v68, %v59
    %v70 = vshrl.u32 %v69, 7
    %v71 = vand.u32 %v69, 127
    %v72 = vsub.s32 0, %v71
    %v73 = vsel %vm67, %v72, %v71
    %vm74 = vcmp.ne.s32.totalorder %v66, 0
    %vm75 = vcmp.ne.s32.totalorder %v73, 0
    %vm76 = vcmp.lt.s32.totalorder %v66, 0
    %vm77 = vcmp.lt.s32.totalorder %v73, 0
    %vm78 = vmand %vm76, %vm74
    %vm79 = vmand %vm77, %vm75
    %v80 = vadd.s32 %v66, 128
    %v81 = vadd.s32 %v73, 128
    %v82 = vsel %vm78, %v80, %v66
    %v83 = vsel %vm79, %v81, %v73
    %vm84 = vcmp.ge.s32.totalorder %v82, 1
    %vm85 = vcmp.ge.s32.totalorder %v83, 1
    %86 = vrot.lane.b32.xlu0 %v55, 1
    %v87 = vpop.permute.xlu0 %86
    %88 = vrot.lane.b32.xlu0 %v56, 1
    %v89 = vpop.permute.xlu0 %88
    %vm90 = vcmp.lt.s32.totalorder %v58, 1
    %v91 = vsel %vm90, %v87, %v89
    %v92 = vsel %vm90, %v89, %v87
    %v93 = vsel %vm84, %v92, 0.0
    %v94 = vsel %vm85, %v91, 0.0
    %vm95 = vcmp.lt.s32.totalorder %v82, 127
    %vm96 = vcmp.lt.s32.totalorder %v83, 127
    %97 = vrot.lane.b32.xlu0 %v55, 127
    %v98 = vpop.permute.xlu0 %97
    %99 = vrot.lane.b32.xlu0 %v56, 127
    %v100 = vpop.permute.xlu0 %99
    %vm101 = vcmp.lt.s32.totalorder %v58, 127
    %v102 = vsel %vm101, %v98, %v100
    %v103 = vsel %vm101, %v100, %v98
    %v104 = vsel %vm95, %v102, 0.0
    %v105 = vsel %vm96, %v103, 0.0
    %106 = vst [vmem:[#allocation2] sm:$0xff] %v93
    %107 = vst [vmem:[#allocation2 + $0x8] sm:$0xff] %v94
    %108 = vst [vmem:[#allocation2 + $0x10] sm:$0xff] %v55
    %109 = vst [vmem:[#allocation2 + $0x18] sm:$0xff] %v56
    %110 = vst [vmem:[#allocation2 + $0x20] sm:$0xff] %v104
    %111 = vst [vmem:[#allocation2 + $0x28] sm:$0xff] %v105
    %v112 = vld [vmem:[#allocation6] sm:$0xf]
    %v113 = vld [vmem:[#allocation2] sm:$0xff]
    %v114 = vld [vmem:[#allocation2 + $0x8] sm:$0xff]
    %v115 = vld [vmem:[#allocation2 + $0x10] sm:$0xff]
    %v116 = vld [vmem:[#allocation2 + $0x18] sm:$0xff]
    %v117 = vld [vmem:[#allocation2 + $0x20] sm:$0xff]
    %v118 = vld [vmem:[#allocation2 + $0x28] sm:$0xff]
    %v119 = vpack.c.bf16 %v115, %v113
    %v120 = vpack.c.bf16 %v116, %v114
    %v121 = vpack.c.bf16 %v117, %v117
    %v122 = vpack.c.bf16 %v118, %v118
    %v123 = vld [vmem:[#allocation8] sm:$0xff]
    %v124 = vld [vmem:[#allocation8 + $0x8] sm:$0xff]
    %vm125 = vcmask 195584
    %v127 = vsel %vm125, %v112, 0
    %vm129 = vcmask 1043456
    %v131 = vsel %vm129, %v121, 0
    %v134 = vsel %vm129, %v122, 0
    %136 = vmatprep.subr.bf16.mxu0 %v120
    %137 = vmatpush1.bf16.msra.mxu0 %v119
    %138 = vmatprep.subr.bf16.mxu0 %v134
    %139 = vmatpush1.bf16.msra.mxu0 %v131
    %140 = vmatprep.subr.bf16.mxu0 0
    %141 = vmatpush1.bf16.msra.mxu0 0
    %142 = vmatprep.subr.bf16.mxu0 0
    %143 = vmatpush1.bf16.msra.mxu0 0
    %144 = vmatprep.subr.bf16.mxu0 0
    %145 = vmatpush1.bf16.msra.mxu0 0
    %146 = vmatprep.subr.bf16.mxu0 0
    %147 = vmatpush1.bf16.msra.mxu0 0
    %148 = vmatprep.subr.bf16.mxu0 0
    %149 = vmatpush1.bf16.msra.mxu0 0
    %150 = vmatprep.subr.bf16.mxu0 0
    %151 = vmatpush1.bf16.msra.mxu0 0
    %152 = vmatprep.subr.bf16.mxu0 0
    %153 = vmatpush1.bf16.msra.mxu0 0
    %154 = vmatprep.subr.bf16.mxu0 0
    %155 = vmatpush1.bf16.msra.mxu0 0
    %156 = vmatprep.subr.bf16.mxu0 0
    %157 = vmatpush1.bf16.msra.mxu0 0
    %158 = vmatprep.subr.bf16.mxu0 0
    %159 = vmatpush1.bf16.msra.mxu0 0
    %160 = vmatprep.subr.bf16.mxu0 0
    %161 = vmatpush1.bf16.msra.mxu0 0
    %162 = vmatprep.subr.bf16.mxu0 0
    %163 = vmatpush1.bf16.msra.mxu0 0
    %164 = vmatprep.subr.bf16.mxu0 0
    %165 = vmatpush1.bf16.msra.mxu0 0
    %166 = vmatprep.subr.bf16.mxu0 0
    %167 = vmatpush1.bf16.msra.mxu0 0
    %168 = vmatprep.mubr.bf16.mxu0 0
    %169 = vmatmul.mubr.bf16.gmra.mrb[0].mxu0 %v127
    %v170 = vpop.f32.mrb[0].mxu0
    %v171 = vadd.f32 %v123, %v170
    %v172 = vpop.f32.mrb[0].mxu0
    %v173 = vadd.f32 %v124, %v172
    %v174 = vpop.f32.mrb[0].mxu0
    %v175 = vpop.f32.mrb[0].mxu0
    %176 = vdwg.mxu0
    %v177 = vtanh.pop %v171
    %v178 = vtanh.pop %v173
    %v179 = vadd.f32 %v55, %v177
    %v180 = vadd.f32 %v56, %v178
    %vm181 = vcmp.ge.s32.totalorder %v82, 2
    %vm182 = vcmp.ge.s32.totalorder %v83, 2
    %183 = vrot.lane.b32.xlu0 %v179, 2
    %v184 = vpop.permute.xlu0 %183
    %185 = vrot.lane.b32.xlu0 %v180, 2
    %v186 = vpop.permute.xlu0 %185
    %vm187 = vcmp.lt.s32.totalorder %v58, 2
    %v188 = vsel %vm187, %v184, %v186
    %v189 = vsel %vm187, %v186, %v184
    %v190 = vsel %vm181, %v189, 0.0
    %v191 = vsel %vm182, %v188, 0.0
    %vm192 = vcmp.lt.s32.totalorder %v82, 126
    %vm193 = vcmp.lt.s32.totalorder %v83, 126
    %194 = vrot.lane.b32.xlu0 %v179, 126
    %v195 = vpop.permute.xlu0 %194
    %196 = vrot.lane.b32.xlu0 %v180, 126
    %v197 = vpop.permute.xlu0 %196
    %vm198 = vcmp.lt.s32.totalorder %v58, 126
    %v199 = vsel %vm198, %v195, %v197
    %v200 = vsel %vm198, %v197, %v195
    %v201 = vsel %vm192, %v199, 0.0
    %v202 = vsel %vm193, %v200, 0.0
    %203 = vst [vmem:[#allocation2] sm:$0xff] %v190
    %204 = vst [vmem:[#allocation2 + $0x8] sm:$0xff] %v191
    %205 = vst [vmem:[#allocation2 + $0x10] sm:$0xff] %v179
    %206 = vst [vmem:[#allocation2 + $0x18] sm:$0xff] %v180
    %207 = vst [vmem:[#allocation2 + $0x20] sm:$0xff] %v201
    %208 = vst [vmem:[#allocation2 + $0x28] sm:$0xff] %v202
    %s209 = scalar_lea.vmem [#allocation6], 4
    %v210 = vld [vmem:[%s209] sm:$0xf]
    %v211 = vld [vmem:[#allocation2] sm:$0xff]
    %v212 = vld [vmem:[#allocation2 + $0x8] sm:$0xff]
    %v213 = vld [vmem:[#allocation2 + $0x10] sm:$0xff]
    %v214 = vld [vmem:[#allocation2 + $0x18] sm:$0xff]
    %v215 = vld [vmem:[#allocation2 + $0x20] sm:$0xff]
    %v216 = vld [vmem:[#allocation2 + $0x28] sm:$0xff]
    %v217 = vpack.c.bf16 %v213, %v211
    %v218 = vpack.c.bf16 %v214, %v212
    %v219 = vpack.c.bf16 %v215, %v215
    %v220 = vpack.c.bf16 %v216, %v216
    %s221 = scalar_lea.vmem [#allocation8], 16
    %v222 = vld [vmem:[%s221] sm:$0xff]
    %v223 = vld [vmem:[%s221 + $0x8] sm:$0xff]
    %v225 = vsel %vm125, %v210, 0
    %v228 = vsel %vm129, %v219, 0
    %v231 = vsel %vm129, %v220, 0
    %233 = vmatprep.subr.bf16.mxu0 %v218
    %234 = vmatpush1.bf16.msra.mxu0 %v217
    %235 = vmatprep.subr.bf16.mxu0 %v231
    %236 = vmatpush1.bf16.msra.mxu0 %v228
    %237 = vmatprep.subr.bf16.mxu0 0
    %238 = vmatpush1.bf16.msra.mxu0 0
    %239 = vmatprep.subr.bf16.mxu0 0
    %240 = vmatpush1.bf16.msra.mxu0 0
    %241 = vmatprep.subr.bf16.mxu0 0
    %242 = vmatpush1.bf16.msra.mxu0 0
    %243 = vmatprep.subr.bf16.mxu0 0
    %244 = vmatpush1.bf16.msra.mxu0 0
    %245 = vmatprep.subr.bf16.mxu0 0
    %246 = vmatpush1.bf16.msra.mxu0 0
    %247 = vmatprep.subr.bf16.mxu0 0
    %248 = vmatpush1.bf16.msra.mxu0 0
    %249 = vmatprep.subr.bf16.mxu0 0
    %250 = vmatpush1.bf16.msra.mxu0 0
    %251 = vmatprep.subr.bf16.mxu0 0
    %252 = vmatpush1.bf16.msra.mxu0 0
    %253 = vmatprep.subr.bf16.mxu0 0
    %254 = vmatpush1.bf16.msra.mxu0 0
    %255 = vmatprep.subr.bf16.mxu0 0
    %256 = vmatpush1.bf16.msra.mxu0 0
    %257 = vmatprep.subr.bf16.mxu0 0
    %258 = vmatpush1.bf16.msra.mxu0 0
    %259 = vmatprep.subr.bf16.mxu0 0
    %260 = vmatpush1.bf16.msra.mxu0 0
    %261 = vmatprep.subr.bf16.mxu0 0
    %262 = vmatpush1.bf16.msra.mxu0 0
    %263 = vmatprep.subr.bf16.mxu0 0
    %264 = vmatpush1.bf16.msra.mxu0 0
    %265 = vmatprep.mubr.bf16.mxu0 0
    %266 = vmatmul.mubr.bf16.gmra.mrb[0].mxu0 %v225
    %v267 = vpop.f32.mrb[0].mxu0
    %v268 = vadd.f32 %v222, %v267
    %v269 = vpop.f32.mrb[0].mxu0
    %v270 = vadd.f32 %v223, %v269
    %v271 = vpop.f32.mrb[0].mxu0
    %v272 = vpop.f32.mrb[0].mxu0
    %273 = vdwg.mxu0
    %v274 = vtanh.pop %v268
    %v275 = vtanh.pop %v270
    %v276 = vadd.f32 %v179, %v274
    %v277 = vadd.f32 %v180, %v275
    %vm278 = vcmp.ge.s32.totalorder %v82, 4
    %vm279 = vcmp.ge.s32.totalorder %v83, 4
    %280 = vrot.lane.b32.xlu0 %v276, 4
    %v281 = vpop.permute.xlu0 %280
    %282 = vrot.lane.b32.xlu0 %v277, 4
    %v283 = vpop.permute.xlu0 %282
    %vm284 = vcmp.lt.s32.totalorder %v58, 4
    %v285 = vsel %vm284, %v281, %v283
    %v286 = vsel %vm284, %v283, %v281
    %v287 = vsel %vm278, %v286, 0.0
    %v288 = vsel %vm279, %v285, 0.0
    %vm289 = vcmp.lt.s32.totalorder %v82, 124
    %vm290 = vcmp.lt.s32.totalorder %v83, 124
    %291 = vrot.lane.b32.xlu0 %v276, 124
    %v292 = vpop.permute.xlu0 %291
    %293 = vrot.lane.b32.xlu0 %v277, 124
    %v294 = vpop.permute.xlu0 %293
    %vm295 = vcmp.lt.s32.totalorder %v58, 124
    %v296 = vsel %vm295, %v292, %v294
    %v297 = vsel %vm295, %v294, %v292
    %v298 = vsel %vm289, %v296, 0.0
    %v299 = vsel %vm290, %v297, 0.0
    %300 = vst [vmem:[#allocation2] sm:$0xff] %v287
    %301 = vst [vmem:[#allocation2 + $0x8] sm:$0xff] %v288
    %302 = vst [vmem:[#allocation2 + $0x10] sm:$0xff] %v276
    %303 = vst [vmem:[#allocation2 + $0x18] sm:$0xff] %v277
    %304 = vst [vmem:[#allocation2 + $0x20] sm:$0xff] %v298
    %305 = vst [vmem:[#allocation2 + $0x28] sm:$0xff] %v299
    %s306 = scalar_lea.vmem [#allocation6], 8
    %v307 = vld [vmem:[%s306] sm:$0xf]
    %v308 = vld [vmem:[#allocation2] sm:$0xff]
    %v309 = vld [vmem:[#allocation2 + $0x8] sm:$0xff]
    %v310 = vld [vmem:[#allocation2 + $0x10] sm:$0xff]
    %v311 = vld [vmem:[#allocation2 + $0x18] sm:$0xff]
    %v312 = vld [vmem:[#allocation2 + $0x20] sm:$0xff]
    %v313 = vld [vmem:[#allocation2 + $0x28] sm:$0xff]
    %v314 = vpack.c.bf16 %v310, %v308
    %v315 = vpack.c.bf16 %v311, %v309
    %v316 = vpack.c.bf16 %v312, %v312
    %v317 = vpack.c.bf16 %v313, %v313
    %s318 = scalar_lea.vmem [#allocation8], 32
    %v319 = vld [vmem:[%s318] sm:$0xff]
    %v320 = vld [vmem:[%s318 + $0x8] sm:$0xff]
    %v322 = vsel %vm125, %v307, 0
    %v325 = vsel %vm129, %v316, 0
    %v328 = vsel %vm129, %v317, 0
    %330 = vmatprep.subr.bf16.mxu0 %v315
    %331 = vmatpush1.bf16.msra.mxu0 %v314
    %332 = vmatprep.subr.bf16.mxu0 %v328
    %333 = vmatpush1.bf16.msra.mxu0 %v325
    %334 = vmatprep.subr.bf16.mxu0 0
    %335 = vmatpush1.bf16.msra.mxu0 0
    %336 = vmatprep.subr.bf16.mxu0 0
    %337 = vmatpush1.bf16.msra.mxu0 0
    %338 = vmatprep.subr.bf16.mxu0 0
    %339 = vmatpush1.bf16.msra.mxu0 0
    %340 = vmatprep.subr.bf16.mxu0 0
    %341 = vmatpush1.bf16.msra.mxu0 0
    %342 = vmatprep.subr.bf16.mxu0 0
    %343 = vmatpush1.bf16.msra.mxu0 0
    %344 = vmatprep.subr.bf16.mxu0 0
    %345 = vmatpush1.bf16.msra.mxu0 0
    %346 = vmatprep.subr.bf16.mxu0 0
    %347 = vmatpush1.bf16.msra.mxu0 0
    %348 = vmatprep.subr.bf16.mxu0 0
    %349 = vmatpush1.bf16.msra.mxu0 0
    %350 = vmatprep.subr.bf16.mxu0 0
    %351 = vmatpush1.bf16.msra.mxu0 0
    %352 = vmatprep.subr.bf16.mxu0 0
    %353 = vmatpush1.bf16.msra.mxu0 0
    %354 = vmatprep.subr.bf16.mxu0 0
    %355 = vmatpush1.bf16.msra.mxu0 0
    %356 = vmatprep.subr.bf16.mxu0 0
    %357 = vmatpush1.bf16.msra.mxu0 0
    %358 = vmatprep.subr.bf16.mxu0 0
    %359 = vmatpush1.bf16.msra.mxu0 0
    %360 = vmatprep.subr.bf16.mxu0 0
    %361 = vmatpush1.bf16.msra.mxu0 0
    %362 = vmatprep.mubr.bf16.mxu0 0
    %363 = vmatmul.mubr.bf16.gmra.mrb[0].mxu0 %v322
    %v364 = vpop.f32.mrb[0].mxu0
    %v365 = vadd.f32 %v319, %v364
    %v366 = vpop.f32.mrb[0].mxu0
    %v367 = vadd.f32 %v320, %v366
    %v368 = vpop.f32.mrb[0].mxu0
    %v369 = vpop.f32.mrb[0].mxu0
    %370 = vdwg.mxu0
    %v371 = vtanh.pop %v365
    %v372 = vtanh.pop %v367
    %v373 = vadd.f32 %v276, %v371
    %v374 = vadd.f32 %v277, %v372
    %vm375 = vcmp.ge.s32.totalorder %v82, 8
    %vm376 = vcmp.ge.s32.totalorder %v83, 8
    %377 = vrot.lane.b32.xlu0 %v373, 8
    %v378 = vpop.permute.xlu0 %377
    %379 = vrot.lane.b32.xlu0 %v374, 8
    %v380 = vpop.permute.xlu0 %379
    %vm381 = vcmp.lt.s32.totalorder %v58, 8
    %v382 = vsel %vm381, %v378, %v380
    %v383 = vsel %vm381, %v380, %v378
    %v384 = vsel %vm375, %v383, 0.0
    %v385 = vsel %vm376, %v382, 0.0
    %vm386 = vcmp.lt.s32.totalorder %v82, 120
    %vm387 = vcmp.lt.s32.totalorder %v83, 120
    %388 = vrot.lane.b32.xlu0 %v373, 120
    %v389 = vpop.permute.xlu0 %388
    %390 = vrot.lane.b32.xlu0 %v374, 120
    %v391 = vpop.permute.xlu0 %390
    %vm392 = vcmp.lt.s32.totalorder %v58, 120
    %v393 = vsel %vm392, %v389, %v391
    %v394 = vsel %vm392, %v391, %v389
    %v395 = vsel %vm386, %v393, 0.0
    %v396 = vsel %vm387, %v394, 0.0
    %397 = vst [vmem:[#allocation2] sm:$0xff] %v384
    %398 = vst [vmem:[#allocation2 + $0x8] sm:$0xff] %v385
    %399 = vst [vmem:[#allocation2 + $0x10] sm:$0xff] %v373
    %400 = vst [vmem:[#allocation2 + $0x18] sm:$0xff] %v374
    %401 = vst [vmem:[#allocation2 + $0x20] sm:$0xff] %v395
    %402 = vst [vmem:[#allocation2 + $0x28] sm:$0xff] %v396
    %s403 = scalar_lea.vmem [#allocation6], 12
    %v404 = vld [vmem:[%s403] sm:$0xf]
    %v405 = vld [vmem:[#allocation2] sm:$0xff]
    %v406 = vld [vmem:[#allocation2 + $0x8] sm:$0xff]
    %v407 = vld [vmem:[#allocation2 + $0x10] sm:$0xff]
    %v408 = vld [vmem:[#allocation2 + $0x18] sm:$0xff]
    %v409 = vld [vmem:[#allocation2 + $0x20] sm:$0xff]
    %v410 = vld [vmem:[#allocation2 + $0x28] sm:$0xff]
    %v411 = vpack.c.bf16 %v407, %v405
    %v412 = vpack.c.bf16 %v408, %v406
    %v413 = vpack.c.bf16 %v409, %v409
    %v414 = vpack.c.bf16 %v410, %v410
    %s415 = scalar_lea.vmem [#allocation8], 48
    %v416 = vld [vmem:[%s415] sm:$0xff]
    %v417 = vld [vmem:[%s415 + $0x8] sm:$0xff]
    %v419 = vsel %vm125, %v404, 0
    %v422 = vsel %vm129, %v413, 0
    %v425 = vsel %vm129, %v414, 0
    %427 = vmatprep.subr.bf16.mxu0 %v412
    %428 = vmatpush1.bf16.msra.mxu0 %v411
    %429 = vmatprep.subr.bf16.mxu0 %v425
    %430 = vmatpush1.bf16.msra.mxu0 %v422
    %431 = vmatprep.subr.bf16.mxu0 0
    %432 = vmatpush1.bf16.msra.mxu0 0
    %433 = vmatprep.subr.bf16.mxu0 0
    %434 = vmatpush1.bf16.msra.mxu0 0
    %435 = vmatprep.subr.bf16.mxu0 0
    %436 = vmatpush1.bf16.msra.mxu0 0
    %437 = vmatprep.subr.bf16.mxu0 0
    %438 = vmatpush1.bf16.msra.mxu0 0
    %439 = vmatprep.subr.bf16.mxu0 0
    %440 = vmatpush1.bf16.msra.mxu0 0
    %441 = vmatprep.subr.bf16.mxu0 0
    %442 = vmatpush1.bf16.msra.mxu0 0
    %443 = vmatprep.subr.bf16.mxu0 0
    %444 = vmatpush1.bf16.msra.mxu0 0
    %445 = vmatprep.subr.bf16.mxu0 0
    %446 = vmatpush1.bf16.msra.mxu0 0
    %447 = vmatprep.subr.bf16.mxu0 0
    %448 = vmatpush1.bf16.msra.mxu0 0
    %449 = vmatprep.subr.bf16.mxu0 0
    %450 = vmatpush1.bf16.msra.mxu0 0
    %451 = vmatprep.subr.bf16.mxu0 0
    %452 = vmatpush1.bf16.msra.mxu0 0
    %453 = vmatprep.subr.bf16.mxu0 0
    %454 = vmatpush1.bf16.msra.mxu0 0
    %455 = vmatprep.subr.bf16.mxu0 0
    %456 = vmatpush1.bf16.msra.mxu0 0
    %457 = vmatprep.subr.bf16.mxu0 0
    %458 = vmatpush1.bf16.msra.mxu0 0
    %459 = vmatprep.mubr.bf16.mxu0 0
    %460 = vmatmul.mubr.bf16.gmra.mrb[0].mxu0 %v419
    %v461 = vpop.f32.mrb[0].mxu0
    %v462 = vadd.f32 %v416, %v461
    %v463 = vpop.f32.mrb[0].mxu0
    %v464 = vadd.f32 %v417, %v463
    %v465 = vpop.f32.mrb[0].mxu0
    %v466 = vpop.f32.mrb[0].mxu0
    %467 = vdwg.mxu0
    %v468 = vtanh.pop %v462
    %v469 = vtanh.pop %v464
    %v470 = vadd.f32 %v373, %v468
    %v471 = vadd.f32 %v374, %v469
    %472 = vst [vmem:[#allocation9] sm:$0xff] %v470
    %473 = vst [vmem:[#allocation9 + $0x8] sm:$0xff] %v471
    // Predicated region
    $region26: #{tpu_custom_call.1} parent=1 // pred_check
      _
    $region27: #{tpu_custom_call.1} parent=1 // pred_check_branch
      %475 = sbr.rel (0) target = $region29
    $region28: #{tpu_custom_call.1} parent=1 // pred_region
      %s477 = ssub.s32 256, 256
      %478 = vsyncadd [#allocation5], %s477
      %s480 = sshll.u32 [#allocation9], 4
      %s481 = int_to_ptr.vmem [resolvable:$true] %s480
      %483 = dma.vmem_to_hbm [thread:$0]  %s481, 256, %s3, [#allocation5]
    $region29: #{tpu_custom_call.1} parent=1 // pred_fallthru
      _
    // Predicated region
    $region30: #{tpu_custom_call.1} parent=1 // pred_check
      _
    $region31: #{tpu_custom_call.1} parent=1 // pred_check_branch
      %485 = sbr.rel (0) target = $region33
    $region32: #{tpu_custom_call.1} parent=1 // pred_region
      %486 = dma.done [#allocation5], 256
    $region33: #{tpu_custom_call.1} parent=1 // pred_fallthru
      _
    %487 = vsyncpa [#allocation4], 1
    %488 = vsyncpa [#allocation7], 1
    %489 = vsyncpa [#allocation5], 1

</llo_original>
